<compile_context>
chip_gen: v7x
topology: tpu7x:2x2x1
jax: 0.10.0
libtpu: 0.0.40
codegen_flags: <defaults>
</compile_context>

<pallas_src>
import math

import jax
import jax.numpy as jnp
from jax import lax
from jax.experimental import pallas as pl
from jax.experimental.pallas import tpu as pltpu


def _build_pe_table(d_model: int, max_len: int) -> jnp.ndarray:
    """Deterministic sinusoidal table, matching the PyTorch __init__ exactly."""
    position = jnp.arange(0, max_len, dtype=jnp.float32)[:, None]           # (max_len, 1)
    div_term = jnp.exp(
        jnp.arange(0, d_model, 2, dtype=jnp.float32)
        * -(math.log(10000.0) / d_model)
    )                                                                        # (d_model//2,)
    pe = jnp.zeros((max_len, d_model), dtype=jnp.float32)
    pe = pe.at[:, 0::2].set(jnp.sin(position * div_term))
    pe = pe.at[:, 1::2].set(jnp.cos(position * div_term))
    return pe


def _round_up(x: int, m: int) -> int:
    return ((x + m - 1) // m) * m


def _gather_kernel(t_ref, pe_ref, out_ref):
    # t_ref  : (B_pad,) int32 in SMEM        (scalar-prefetched timesteps)
    # pe_ref : (max_len, d_model) f32 in VMEM (whole table, revisited block)
    # out_ref: (tile_b, d_model) f32 in VMEM  (dense output slab for this step)
    tile_b = out_ref.shape[0]
    base = pl.program_id(0) * tile_b

    def body(i, carry):
        idx = t_ref[base + i]                       # scalar read from SMEM
        # Dynamic row gather from the VMEM-resident table -> dense row store.
        out_ref[pl.ds(i, 1), :] = pe_ref[pl.ds(idx, 1), :]
        return carry

    # tile_b is small (<= 128); unroll so the LLO scheduler sees the row copies.
    lax.fori_loop(0, tile_b, body, 0, unroll=True if tile_b <= 32 else 8)


def fixed_time_embeddings(t: jnp.ndarray, pe: jnp.ndarray, *, tile_b: int | None = None) -> jnp.ndarray:
    """Pallas equivalent of FixedTimeEmbeddings.forward: returns pe[t]."""
    max_len, d_model = pe.shape
    # Clamp untrusted timestep indices so the in-kernel dynamic load stays in bounds.
    t = jnp.clip(t.astype(jnp.int32), 0, max_len - 1)
    (batch,) = t.shape

    if tile_b is None:
        # Sublane-dense tile (multiple of 8), amortizing per-step overhead
        # without blowing up the unrolled in-kernel loop.
        tile_b = min(128, _round_up(batch, 8))
    b_pad = _round_up(batch, tile_b)
    if b_pad != batch:
        t = jnp.pad(t, (0, b_pad - batch))          # padded rows gather row 0; sliced off below

    grid_spec = pltpu.PrefetchScalarGridSpec(
        num_scalar_prefetch=1,                      # t lands in SMEM
        grid=(b_pad // tile_b,),
        in_specs=[
            # Whole pe table resident in VMEM; same block index every step so
            # the pipeline DMAs it from HBM exactly once.
            # (128 KiB at the example shapes — far under every generation's
            #  VMEM budget, including v7x's 64 MiB.)
            pl.BlockSpec((max_len, d_model), lambda g, t_sm: (0, 0)),
        ],
        out_specs=pl.BlockSpec((tile_b, d_model), lambda g, t_sm: (g, 0)),
    )

    out = pl.pallas_call(
        _gather_kernel,
        grid_spec=grid_spec,
        out_shape=jax.ShapeDtypeStruct((b_pad, d_model), pe.dtype),
        compiler_params=pltpu.CompilerParams(
            # Batch tiles are independent -> shard across v7x's 2 TensorCores.
            dimension_semantics=("parallel",),
        ),
    )(t, pe)

    return out[:batch]


if __name__ == "__main__":
    # Small, deterministic example shapes.
    d_model = 128
    max_len = 256
    batch = 8

    pe = _build_pe_table(d_model, max_len)

    key = jax.random.PRNGKey(0)
    t = jax.random.randint(key, (batch,), minval=0, maxval=max_len, dtype=jnp.int32)

    out = fixed_time_embeddings(t, pe)
    out = jax.block_until_ready(out)

    # Reference check (plain JAX gather).
    ref = pe[t]
    assert out.shape == (batch, d_model), out.shape
    assert out.dtype == jnp.float32, out.dtype
    assert jnp.allclose(out, ref), "mismatch vs reference gather"

    print("KERNEL_OK")
</pallas_src>

<mosaic_0001>
module attributes {stable_mosaic.version = 11 : i64} {
  func.func @_gather_kernel(%arg0: i32, %arg1: memref<8xi32, #tpu.memory_space<smem>>, %arg2: memref<256x128xf32, #tpu.memory_space<vmem>>, %arg3: memref<8x128xf32, #tpu.memory_space<vmem>>) attributes {dimension_semantics = [#tpu.dimension_semantics<parallel>], iteration_bounds = array<i64: 1>, scalar_prefetch = 1 : i64, scratch_operands = 0 : i64, tpu.core_type = #tpu.core_type<tc>, window_params = [{pipeline_mode = #tpu.pipeline_mode<synchronous>, transform_indices = @transform_0, window_bounds = array<i64: 256, 128>}, {transform_indices = @transform_1, window_bounds = array<i64: 8, 128>}]} {
    %c8_i32 = arith.constant 8 : i32
    %0 = arith.muli %arg0, %c8_i32 : i32
    %c0_i32 = arith.constant 0 : i32
    %1 = arith.addi %0, %c0_i32 : i32
    %2 = arith.index_cast %1 : i32 to index
    %3 = memref.load %arg1[%2] : memref<8xi32, #tpu.memory_space<smem>>
    %4 = arith.index_cast %3 : i32 to index
    %c0 = arith.constant 0 : index
    %5 = vector.load %arg2[%4, %c0] : memref<256x128xf32, #tpu.memory_space<vmem>>, vector<1x128xf32>
    %6 = arith.index_cast %c0_i32 : i32 to index
    %c0_0 = arith.constant 0 : index
    %7 = vector.load %arg3[%6, %c0_0] : memref<8x128xf32, #tpu.memory_space<vmem>>, vector<1x128xf32>
    tpu.vector_store %arg3[%6, %c0_0], %5 {strides = array<i32>} : memref<8x128xf32, #tpu.memory_space<vmem>>, vector<1x128xf32>,
    %c1_i32 = arith.constant 1 : i32
    %8 = arith.addi %0, %c1_i32 : i32
    %9 = arith.index_cast %8 : i32 to index
    %10 = memref.load %arg1[%9] : memref<8xi32, #tpu.memory_space<smem>>
    %11 = arith.index_cast %10 : i32 to index
    %c0_1 = arith.constant 0 : index
    %12 = vector.load %arg2[%11, %c0_1] : memref<256x128xf32, #tpu.memory_space<vmem>>, vector<1x128xf32>
    %13 = arith.index_cast %c1_i32 : i32 to index
    %c0_2 = arith.constant 0 : index
    %14 = vector.load %arg3[%13, %c0_2] : memref<8x128xf32, #tpu.memory_space<vmem>>, vector<1x128xf32>
    tpu.vector_store %arg3[%13, %c0_2], %12 {strides = array<i32>} : memref<8x128xf32, #tpu.memory_space<vmem>>, vector<1x128xf32>,
    %c2_i32 = arith.constant 2 : i32
    %15 = arith.addi %0, %c2_i32 : i32
    %16 = arith.index_cast %15 : i32 to index
    %17 = memref.load %arg1[%16] : memref<8xi32, #tpu.memory_space<smem>>
    %18 = arith.index_cast %17 : i32 to index
    %c0_3 = arith.constant 0 : index
    %19 = vector.load %arg2[%18, %c0_3] : memref<256x128xf32, #tpu.memory_space<vmem>>, vector<1x128xf32>
    %20 = arith.index_cast %c2_i32 : i32 to index
    %c0_4 = arith.constant 0 : index
    %21 = vector.load %arg3[%20, %c0_4] : memref<8x128xf32, #tpu.memory_space<vmem>>, vector<1x128xf32>
    tpu.vector_store %arg3[%20, %c0_4], %19 {strides = array<i32>} : memref<8x128xf32, #tpu.memory_space<vmem>>, vector<1x128xf32>,
    %c3_i32 = arith.constant 3 : i32
    %22 = arith.addi %0, %c3_i32 : i32
    %23 = arith.index_cast %22 : i32 to index
    %24 = memref.load %arg1[%23] : memref<8xi32, #tpu.memory_space<smem>>
    %25 = arith.index_cast %24 : i32 to index
    %c0_5 = arith.constant 0 : index
    %26 = vector.load %arg2[%25, %c0_5] : memref<256x128xf32, #tpu.memory_space<vmem>>, vector<1x128xf32>
    %27 = arith.index_cast %c3_i32 : i32 to index
    %c0_6 = arith.constant 0 : index
    %28 = vector.load %arg3[%27, %c0_6] : memref<8x128xf32, #tpu.memory_space<vmem>>, vector<1x128xf32>
    tpu.vector_store %arg3[%27, %c0_6], %26 {strides = array<i32>} : memref<8x128xf32, #tpu.memory_space<vmem>>, vector<1x128xf32>,
    %c4_i32 = arith.constant 4 : i32
    %29 = arith.addi %0, %c4_i32 : i32
    %30 = arith.index_cast %29 : i32 to index
    %31 = memref.load %arg1[%30] : memref<8xi32, #tpu.memory_space<smem>>
    %32 = arith.index_cast %31 : i32 to index
    %c0_7 = arith.constant 0 : index
    %33 = vector.load %arg2[%32, %c0_7] : memref<256x128xf32, #tpu.memory_space<vmem>>, vector<1x128xf32>
    %34 = arith.index_cast %c4_i32 : i32 to index
    %c0_8 = arith.constant 0 : index
    %35 = vector.load %arg3[%34, %c0_8] : memref<8x128xf32, #tpu.memory_space<vmem>>, vector<1x128xf32>
    tpu.vector_store %arg3[%34, %c0_8], %33 {strides = array<i32>} : memref<8x128xf32, #tpu.memory_space<vmem>>, vector<1x128xf32>,
    %c5_i32 = arith.constant 5 : i32
    %36 = arith.addi %0, %c5_i32 : i32
    %37 = arith.index_cast %36 : i32 to index
    %38 = memref.load %arg1[%37] : memref<8xi32, #tpu.memory_space<smem>>
    %39 = arith.index_cast %38 : i32 to index
    %c0_9 = arith.constant 0 : index
    %40 = vector.load %arg2[%39, %c0_9] : memref<256x128xf32, #tpu.memory_space<vmem>>, vector<1x128xf32>
    %41 = arith.index_cast %c5_i32 : i32 to index
    %c0_10 = arith.constant 0 : index
    %42 = vector.load %arg3[%41, %c0_10] : memref<8x128xf32, #tpu.memory_space<vmem>>, vector<1x128xf32>
    tpu.vector_store %arg3[%41, %c0_10], %40 {strides = array<i32>} : memref<8x128xf32, #tpu.memory_space<vmem>>, vector<1x128xf32>,
    %c6_i32 = arith.constant 6 : i32
    %43 = arith.addi %0, %c6_i32 : i32
    %44 = arith.index_cast %43 : i32 to index
    %45 = memref.load %arg1[%44] : memref<8xi32, #tpu.memory_space<smem>>
    %46 = arith.index_cast %45 : i32 to index
    %c0_11 = arith.constant 0 : index
    %47 = vector.load %arg2[%46, %c0_11] : memref<256x128xf32, #tpu.memory_space<vmem>>, vector<1x128xf32>
    %48 = arith.index_cast %c6_i32 : i32 to index
    %c0_12 = arith.constant 0 : index
    %49 = vector.load %arg3[%48, %c0_12] : memref<8x128xf32, #tpu.memory_space<vmem>>, vector<1x128xf32>
    tpu.vector_store %arg3[%48, %c0_12], %47 {strides = array<i32>} : memref<8x128xf32, #tpu.memory_space<vmem>>, vector<1x128xf32>,
    %c7_i32 = arith.constant 7 : i32
    %50 = arith.addi %0, %c7_i32 : i32
    %51 = arith.index_cast %50 : i32 to index
    %52 = memref.load %arg1[%51] : memref<8xi32, #tpu.memory_space<smem>>
    %53 = arith.index_cast %52 : i32 to index
    %c0_13 = arith.constant 0 : index
    %54 = vector.load %arg2[%53, %c0_13] : memref<256x128xf32, #tpu.memory_space<vmem>>, vector<1x128xf32>
    %55 = arith.index_cast %c7_i32 : i32 to index
    %c0_14 = arith.constant 0 : index
    %56 = vector.load %arg3[%55, %c0_14] : memref<8x128xf32, #tpu.memory_space<vmem>>, vector<1x128xf32>
    tpu.vector_store %arg3[%55, %c0_14], %54 {strides = array<i32>} : memref<8x128xf32, #tpu.memory_space<vmem>>, vector<1x128xf32>,
    %c8_i32_15 = arith.constant 8 : i32
    return
  }
  func.func @transform_0(%arg0: i32, %arg1: memref<8xi32, #tpu.memory_space<smem>>) -> (i32, i32) {
    %c0_i32 = arith.constant 0 : i32
    %c0_i32_0 = arith.constant 0 : i32
    %c0_i32_1 = arith.constant 0 : i32
    return %c0_i32, %c0_i32_0 : i32, i32
  }
  func.func @transform_1(%arg0: i32, %arg1: memref<8xi32, #tpu.memory_space<smem>>) -> (i32, i32) {
    %c0_i32 = arith.constant 0 : i32
    %c0_i32_0 = arith.constant 0 : i32
    return %arg0, %c0_i32 : i32, i32
  }
}

</mosaic_0001>

<llo_original>
// kernel: tpu_custom_call.1
$region0: #{tpu_custom_call.1}
  #allocation0 [shape = 'u32[]', space=smem, size = 0x4, offset = 0x4, fixed_abs, tag = 'smem constant byte address 0x4 - core index']
  #allocation1 [shape = 'u32[144,128]{1,0:T(1,128)}', space=vmem, size = 0x12000, scoped, tag = 'internal scratch']
  #allocation2 [shape = 's32[1]{0}', space=sflag, size = 0x4, scoped, tag = 'scoped memory for tpu_custom_call.1']
  #allocation3 [shape = 'u8[512]{0}', space=smem, size = 0x200, scoped, tag = 'prefetched SMEM operand 0']
  %s0 = inlined_call_operand.hbm [shape: s32[8], index: 0, kind: input, shape index: {}]
  %s1 = inlined_call_operand.hbm [shape: f32[256,128], index: 1, kind: input, shape index: {}]
  %s2 = inlined_call_operand.hbm [shape: f32[8,128], index: 2, kind: output, shape index: {}]
  %s3 = sld [smem:[#allocation0]]
  $region18: #{tpu_custom_call.1} parent=0
    _
  %s5 = ssub.s32 1, %s3
  %s6 = scalar_select 0, %s5, %s3
  %8 = dma.hbm_to_smem %s0, 16, [#allocation3], [#allocation2]
  %9 = dma.done [#allocation2], 16
  %10 = sfence
  $region1: #{tpu_custom_call.1} parent=0
    #allocation4 [shape = 'u8[131072]{0}', space=vmem, size = 0x20000, scoped, tag = 'input window, operand 1, single buffered']
    #allocation5 [shape = 's32[1]{0}', space=sflag, size = 0x4, scoped, tag = 'scoped memory for tpu_custom_call.1']
    #allocation6 [shape = 's32[1]{0}', space=sflag, size = 0x4, scoped, tag = 'scoped memory for tpu_custom_call.1']
    #allocation7 [shape = 'u8[4096]{0}', space=vmem, size = 0x1000, scoped, tag = 'output window, operand 0, single buffered']
    %11 = vsyncpa [#allocation5], 0
    %12 = vsyncpa [#allocation6], 0
    // Predicated region
    $region2: #{tpu_custom_call.1} parent=1 // pred_check
      _
    $region3: #{tpu_custom_call.1} parent=1 // pred_check_branch
      %14 = sbr.rel (0) target = $region5
    $region4: #{tpu_custom_call.1} parent=1 // pred_region
      %s16 = ssub.s32 4096, 4096
      %17 = vsyncadd [#allocation5], %s16
      %s18 = sshll.u32 [#allocation4], 4
      %s19 = int_to_ptr.vmem [resolvable:$true] %s18
      %24 = dma.hbm_to_vmem [thread:$0]  %s1, 4096, %s19, [#allocation5], 128, 128, 8
    $region5: #{tpu_custom_call.1} parent=1 // pred_fallthru
      _
    // Predicated region
    $region6: #{tpu_custom_call.1} parent=1 // pred_check
      _
    $region7: #{tpu_custom_call.1} parent=1 // pred_check_branch
      %26 = sbr.rel (0) target = $region9
    $region8: #{tpu_custom_call.1} parent=1 // pred_region
      %27 = dma.done [#allocation5], 4096
    $region9: #{tpu_custom_call.1} parent=1 // pred_fallthru
      _
    %s28 = smul.u32 0, 8
    %s29 = sld [smem:[#allocation3 + %s28]]
    %s30 = scalar_lea.vmem [#allocation4], %s29
    %v31 = vld [vmem:[%s30] sm:$0x1]
    %32 = vst [vmem:[#allocation7] sm:$0x1] %v31
    %s33 = sadd.s32 %s28, 1
    %s34 = sld [smem:[#allocation3 + %s33]]
    %s35 = scalar_lea.vmem [#allocation4], %s34
    %v36 = vld [vmem:[%s35] sm:$0x1]
    %37 = vst [vmem:[#allocation7 + $0x1] sm:$0x1] %v36
    %s38 = sadd.s32 %s28, 2
    %s39 = sld [smem:[#allocation3 + %s38]]
    %s40 = scalar_lea.vmem [#allocation4], %s39
    %v41 = vld [vmem:[%s40] sm:$0x1]
    %42 = vst [vmem:[#allocation7 + $0x2] sm:$0x1] %v41
    %s43 = sadd.s32 %s28, 3
    %s44 = sld [smem:[#allocation3 + %s43]]
    %s45 = scalar_lea.vmem [#allocation4], %s44
    %v46 = vld [vmem:[%s45] sm:$0x1]
    %47 = vst [vmem:[#allocation7 + $0x3] sm:$0x1] %v46
    %s48 = sadd.s32 %s28, 4
    %s49 = sld [smem:[#allocation3 + %s48]]
    %s50 = scalar_lea.vmem [#allocation4], %s49
    %v51 = vld [vmem:[%s50] sm:$0x1]
    %52 = vst [vmem:[#allocation7 + $0x4] sm:$0x1] %v51
    %s53 = sadd.s32 %s28, 5
    %s54 = sld [smem:[#allocation3 + %s53]]
    %s55 = scalar_lea.vmem [#allocation4], %s54
    %v56 = vld [vmem:[%s55] sm:$0x1]
    %57 = vst [vmem:[#allocation7 + $0x5] sm:$0x1] %v56
    %s58 = sadd.s32 %s28, 6
    %s59 = sld [smem:[#allocation3 + %s58]]
    %s60 = scalar_lea.vmem [#allocation4], %s59
    %v61 = vld [vmem:[%s60] sm:$0x1]
    %62 = vst [vmem:[#allocation7 + $0x6] sm:$0x1] %v61
    %s63 = sadd.s32 %s28, 7
    %s64 = sld [smem:[#allocation3 + %s63]]
    %s65 = scalar_lea.vmem [#allocation4], %s64
    %v66 = vld [vmem:[%s65] sm:$0x1]
    %67 = vst [vmem:[#allocation7 + $0x7] sm:$0x1] %v66
    // Predicated region
    $region10: #{tpu_custom_call.1} parent=1 // pred_check
      _
    $region11: #{tpu_custom_call.1} parent=1 // pred_check_branch
      %69 = sbr.rel (0) target = $region13
    $region12: #{tpu_custom_call.1} parent=1 // pred_region
      %s71 = ssub.s32 128, 128
      %72 = vsyncadd [#allocation6], %s71
      %s74 = sshll.u32 [#allocation7], 4
      %s75 = int_to_ptr.vmem [resolvable:$true] %s74
      %77 = dma.vmem_to_hbm [thread:$0]  %s75, 128, %s2, [#allocation6]
    $region13: #{tpu_custom_call.1} parent=1 // pred_fallthru
      _
    // Predicated region
    $region14: #{tpu_custom_call.1} parent=1 // pred_check
      _
    $region15: #{tpu_custom_call.1} parent=1 // pred_check_branch
      %79 = sbr.rel (0) target = $region17
    $region16: #{tpu_custom_call.1} parent=1 // pred_region
      %80 = dma.done [#allocation6], 128
    $region17: #{tpu_custom_call.1} parent=1 // pred_fallthru
      _
    %81 = vsyncpa [#allocation5], 1
    %82 = vsyncpa [#allocation6], 1

</llo_original>
